<compile_context>
chip_gen: v7x
topology: tpu7x:2x2x1
jax: 0.10.0
libtpu: 0.0.40
codegen_flags: <defaults>
</compile_context>

<pallas_src>
import jax
import jax.numpy as jnp
from jax.experimental import pallas as pl
from jax.experimental.pallas import tpu as pltpu

_LANE = 128


def _qcfs_kernel(params_ref, x_ref, o_ref, *, t):
    # params_ref: (1, 2) f32 in SMEM -> [t/up, up/t], precomputed in the wrapper.
    # x_ref / o_ref: (block_rows, 128) VMEM tiles in the activation's dtype.
    scale = params_ref[0, 0]              # t / up
    inv = params_ref[0, 1]                # up / t (exact)
    t_f = jnp.float32(t)
    x = x_ref[...].astype(jnp.float32)    # native-dtype HBM I/O, f32 math
    q = jnp.floor(x * scale + jnp.float32(0.5))
    q = jnp.clip(q, jnp.float32(0.0), t_f)
    o_ref[...] = (q * inv).astype(o_ref.dtype)


def _choose_block_rows(rows, itemsize, target_block_bytes=4 * 1024 * 1024):
    """Byte-budgeted block rows: ~4 MiB blocks, >=2 grid steps when possible."""
    # sublane packing: bf16/int8 pack 16+ rows per vreg -> round to 16; f32 -> 8.
    sub = 16 if itemsize < 4 else 8
    br = max(sub, target_block_bytes // (_LANE * itemsize))
    # Cap so the grid has >= 2 steps (keeps both v7x TensorCores busy).
    br = min(br, max(sub, pl.cdiv(rows, 2)))
    br = (br // sub) * sub
    if rows <= br:
        return rows                       # full-array block is always legal
    return br


def _qcfs_bulk(x2d, params, t, donate):
    rows = x2d.shape[0]
    itemsize = jnp.dtype(x2d.dtype).itemsize
    br = _choose_block_rows(rows, itemsize)
    grid = (pl.cdiv(rows, br),)

    block_bytes = br * _LANE * itemsize
    vmem_limit = int(min(40 * 1024 * 1024,
                         max(16 * 1024 * 1024, 4 * block_bytes + 2 * 1024 * 1024)))

    return pl.pallas_call(
        lambda p_ref, x_ref, o_ref: _qcfs_kernel(p_ref, x_ref, o_ref, t=t),
        out_shape=jax.ShapeDtypeStruct((rows, _LANE), x2d.dtype),
        grid_spec=pltpu.PrefetchScalarGridSpec(
            num_scalar_prefetch=0,
            grid=grid,
            in_specs=[
                # scalar params: whole (1,2) array in SMEM, same block every step
                pl.BlockSpec((1, 2), lambda i: (0, 0),
                             memory_space=pltpu.MemorySpace.SMEM),
                pl.BlockSpec((br, _LANE), lambda i: (i, 0)),
            ],
            out_specs=pl.BlockSpec((br, _LANE), lambda i: (i, 0)),
        ),
        compiler_params=pltpu.CompilerParams(
            dimension_semantics=("parallel",),
            vmem_limit_bytes=vmem_limit,
        ),
        input_output_aliases=({1: 0} if donate else {}),
    )(params, x2d)


def qcfs_forward(x, up, t=32, donate=False):
    """Apply QCFS elementwise.

    x:      activation of any shape (e.g. NCHW); its dtype is kept for HBM I/O.
    up:     learnable scalar parameter, shape (1,) (or scalar).
    t:      quantization steps (int > 0).
    donate: alias x's HBM buffer to the output (caller must not reuse x).
    """
    orig_shape = x.shape
    dtype = x.dtype

    upf = jnp.asarray(up, dtype=jnp.float32).reshape(())
    t_f = jnp.float32(t)
    scale = t_f / upf                     # t / up
    inv = upf / t_f                       # up / t (exact)
    params = jnp.stack([scale, inv]).reshape(1, 2)

    xf = x.reshape(-1)
    n = xf.shape[0]
    n_bulk = (n // _LANE) * _LANE

    if n_bulk == n:
        # Aligned: pure reshape, no padding / extra HBM passes.
        out2d = _qcfs_bulk(xf.reshape(n // _LANE, _LANE), params, t, donate)
        return out2d.reshape(orig_shape)

    # Ragged: kernel on the 128-aligned bulk, plain jnp on the (<128) tail.
    pieces = []
    if n_bulk > 0:
        bulk2d = xf[:n_bulk].reshape(n_bulk // _LANE, _LANE)
        pieces.append(_qcfs_bulk(bulk2d, params, t, donate).reshape(-1))
    tail = xf[n_bulk:].astype(jnp.float32)
    q = jnp.clip(jnp.floor(tail * scale + 0.5), 0.0, t_f)
    pieces.append((q * inv).astype(dtype))
    return jnp.concatenate(pieces).reshape(orig_shape)


def qcfs_reference(x, up, t=32):
    # Exact original (PyTorch) formula, computed in f32, cast back to x.dtype.
    xf = x.astype(jnp.float32)
    upf = jnp.asarray(up, dtype=jnp.float32)
    y = xf / upf
    y = jnp.floor(y * t + 0.5) / t
    y = jnp.clip(y, 0.0, 1.0)
    y = y * upf
    return y.astype(x.dtype)


if __name__ == "__main__":
    key = jax.random.PRNGKey(0)
    t = 32
    # deterministic parameter init, matching nn.Parameter(torch.tensor([8.0]))
    up = jnp.array([8.0], dtype=jnp.float32)

    # Primary check: small NCHW activation, f32 (matches the module's usage).
    x = jax.random.normal(key, (2, 4, 16, 16), dtype=jnp.float32) * 10.0
    y = jax.block_until_ready(qcfs_forward(x, up, t=t))
    y_ref = qcfs_reference(x, up, t=t)
    assert y.shape == x.shape and y.dtype == x.dtype
    assert jnp.allclose(y, y_ref, atol=1e-6, rtol=1e-6), "f32 mismatch vs reference"

    # Ragged size -> 128-aligned bulk through the kernel + jnp tail, no padding.
    x2 = jax.random.normal(jax.random.PRNGKey(1), (3, 5, 7, 11), dtype=jnp.float32) * 10.0
    y2 = jax.block_until_ready(qcfs_forward(x2, up, t=t))
    assert y2.shape == x2.shape and y2.dtype == x2.dtype
    assert jnp.allclose(y2, qcfs_reference(x2, up, t=t), atol=1e-6, rtol=1e-6), \
        "ragged mismatch vs reference"

    # bf16 HBM I/O path (upcast to f32 happens inside the kernel).
    xb = x.astype(jnp.bfloat16)
    yb = jax.block_until_ready(qcfs_forward(xb, up, t=t))
    assert yb.shape == xb.shape and yb.dtype == jnp.bfloat16
    assert jnp.allclose(
        yb.astype(jnp.float32),
        qcfs_reference(xb, up, t=t).astype(jnp.float32),
        atol=1e-6, rtol=1e-6,
    ), "bf16 mismatch vs reference"

    # Donated-buffer path (input_output_aliases) sanity check.
    yd = jax.block_until_ready(qcfs_forward(x, up, t=t, donate=True))
    assert jnp.allclose(yd, y_ref, atol=1e-6, rtol=1e-6), "donate mismatch vs reference"

    print("KERNEL_OK")
</pallas_src>

<mosaic_0001>
module attributes {stable_mosaic.version = 11 : i64} {
  func.func @_lambda_(%arg0: i32, %arg1: memref<1x2xf32, #tpu.memory_space<smem>>, %arg2: memref<8x128xf32, #tpu.memory_space<vmem>>, %arg3: memref<8x128xf32, #tpu.memory_space<vmem>>) attributes {dimension_semantics = [#tpu.dimension_semantics<parallel>], iteration_bounds = array<i64: 2>, scalar_prefetch = 0 : i64, scratch_operands = 0 : i64, tpu.core_type = #tpu.core_type<tc>, window_params = [{transform_indices = @transform_0, window_bounds = array<i64: 1, 2>}, {transform_indices = @transform_1, window_bounds = array<i64: 8, 128>}, {transform_indices = @transform_2, window_bounds = array<i64: 8, 128>}]} {
    %c0 = arith.constant 0 : index
    %c0_0 = arith.constant 0 : index
    %0 = memref.load %arg1[%c0, %c0_0] : memref<1x2xf32, #tpu.memory_space<smem>>
    %c0_1 = arith.constant 0 : index
    %c1 = arith.constant 1 : index
    %1 = memref.load %arg1[%c0_1, %c1] : memref<1x2xf32, #tpu.memory_space<smem>>
    %c0_2 = arith.constant 0 : index
    %c0_3 = arith.constant 0 : index
    %2 = vector.load %arg2[%c0_2, %c0_3] : memref<8x128xf32, #tpu.memory_space<vmem>>, vector<8x128xf32>
    %3 = vector.broadcast %0 : f32 to vector<8x128xf32>
    %4 = arith.mulf %2, %3 : vector<8x128xf32>
    %cst = arith.constant 5.000000e-01 : f32
    %5 = vector.broadcast %cst : f32 to vector<8x128xf32>
    %6 = arith.addf %4, %5 : vector<8x128xf32>
    %7 = math.floor %6 : vector<8x128xf32>
    %cst_4 = arith.constant 0.000000e+00 : f32
    %cst_5 = arith.constant 3.200000e+01 : f32
    %8 = vector.broadcast %cst_4 : f32 to vector<8x128xf32>
    %9 = arith.maximumf %8, %7 : vector<8x128xf32>
    %10 = vector.broadcast %cst_5 : f32 to vector<8x128xf32>
    %11 = arith.minimumf %10, %9 : vector<8x128xf32>
    %12 = vector.broadcast %1 : f32 to vector<8x128xf32>
    %13 = arith.mulf %11, %12 : vector<8x128xf32>
    %c0_6 = arith.constant 0 : index
    %c0_7 = arith.constant 0 : index
    %14 = vector.load %arg3[%c0_6, %c0_7] : memref<8x128xf32, #tpu.memory_space<vmem>>, vector<8x128xf32>
    tpu.vector_store %arg3[%c0_6, %c0_7], %13 {strides = array<i32>} : memref<8x128xf32, #tpu.memory_space<vmem>>, vector<8x128xf32>,
    return
  }
  func.func @transform_0(%arg0: i32) -> (i32, i32) {
    %c0_i32 = arith.constant 0 : i32
    %c0_i32_0 = arith.constant 0 : i32
    %c0_i32_1 = arith.constant 0 : i32
    return %c0_i32, %c0_i32_0 : i32, i32
  }
  func.func @transform_1(%arg0: i32) -> (i32, i32) {
    %c0_i32 = arith.constant 0 : i32
    %c0_i32_0 = arith.constant 0 : i32
    return %arg0, %c0_i32 : i32, i32
  }
  func.func @transform_2(%arg0: i32) -> (i32, i32) {
    %c0_i32 = arith.constant 0 : i32
    %c0_i32_0 = arith.constant 0 : i32
    return %arg0, %c0_i32 : i32, i32
  }
}

</mosaic_0001>

<llo_original>
// kernel: tpu_custom_call.1
$region0: #{tpu_custom_call.1}
  #allocation0 [shape = 'u32[]', space=smem, size = 0x4, offset = 0x4, fixed_abs, tag = 'smem constant byte address 0x4 - core index']
  #allocation1 [shape = 'u32[144,128]{1,0:T(1,128)}', space=vmem, size = 0x12000, scoped, tag = 'internal scratch']
  %s0 = inlined_call_operand.hbm [shape: f32[1,2], index: 0, kind: input, shape index: {}]
  %s1 = inlined_call_operand.hbm [shape: f32[16,128], index: 1, kind: input, shape index: {}]
  %s2 = inlined_call_operand.hbm [shape: f32[16,128], index: 2, kind: output, shape index: {}]
  %s3 = sld [smem:[#allocation0]]
  $region49: #{tpu_custom_call.1} parent=0
    _
  %s5 = ssub.s32 1, %s3
  %s6 = scalar_select 0, %s5, %s3
  $region1: #{tpu_custom_call.1} parent=0
    #allocation2 [shape = 'u8[512]{0}', space=smem, size = 0x200, scoped, tag = 'input window, operand 0, single buffered']
    #allocation3 [shape = 's32[2]{0}', space=sflag, size = 0x8, scoped, tag = 'scoped memory for tpu_custom_call.1']
    #allocation4 [shape = 's32[2]{0}', space=sflag, size = 0x8, scoped, tag = 'scoped memory for tpu_custom_call.1']
    #allocation5 [shape = 's32[2]{0}', space=sflag, size = 0x8, scoped, tag = 'scoped memory for tpu_custom_call.1']
    #allocation6 [shape = 'u8[8192]{0}', space=vmem, size = 0x2000, scoped, tag = 'input window, operand 1']
    #allocation7 [shape = 'u8[8192]{0}', space=vmem, size = 0x2000, scoped, tag = 'output window, operand 0']
    %7 = vsyncpa [#allocation5], 0
    %8 = vsyncpa [#allocation3], 0
    %s9 = scalar_lea.sflag [#allocation3], 1
    %10 = vsyncpa %s9, 0
    %11 = vsyncpa [#allocation4], 0
    %s12 = scalar_lea.sflag [#allocation4], 1
    %13 = vsyncpa %s12, 0
    loop: start=0, step=1, limit=4
    $region2: #{tpu_custom_call.1} parent=1 // loop_pre_header
      _
    $region3: #{tpu_custom_call.1} parent=1 // loop_header
      %s15 = sphi 0, %s19
      %p16 = scmp.ge.s32.totalorder %s15, 4
      %s23 = sphi 0, %s23
      %s25 = sphi 0, %s23
      %s26 = sphi 0, %s25
      %s40 = sphi 0, %s26
      %s46 = sphi 0, %s48
      %s49 = sphi 0, %s46
      %s50 = sphi 0, %s49
      %s66 = sphi 0, %s50
      %s72 = sphi 0, %s74
      %s75 = sphi 0, %s72
      %s76 = sphi 0, %s75
      %s92 = sphi 0, %s76
    $region4: #{tpu_custom_call.1} parent=1 // loop_header_branch
      %18 = sbr.rel (%p16) target = $region8
    $region5: #{tpu_custom_call.1} parent=1 // loop_body
      %s20 = ssub.s32 %s15, 1
      %s21 = ssub.s32 %s15, 2
      %s22 = sadd.s32 %s15, 1
      %s24 = sadd.s32 %s23, 1
      %p27 = scmp.eq.s32.totalorder %s15, 1
      %p28 = scmp.ne.s32.totalorder %s23, %s25
      %p29 = scmp.eq.s32.totalorder %s15, 0
      %p30 = por %p28, %p29
      %p31 = scmp.ne.s32.totalorder %s23, %s25
      %p32 = scmp.eq.s32.totalorder %s20, 1
      %p33 = por %p31, %p32
      %p34 = scmp.ne.s32.totalorder %s25, %s26
      %p35 = scmp.eq.s32.totalorder %s20, 0
      %p36 = por %p34, %p35
      %p37 = scmp.ne.s32.totalorder %s25, %s26
      %p38 = scmp.eq.s32.totalorder %s21, 1
      %p39 = por %p37, %p38
      %p41 = scmp.ne.s32.totalorder %s26, %s40
      %p42 = scmp.eq.s32.totalorder %s21, 0
      %p43 = por %p41, %p42
      %s44 = ssub.s32 %s15, %s22
      %p45 = scmp.eq.s32.totalorder %s44, 0
      %s47 = sadd.s32 %s46, 1
      %s48 = scalar_select %p45, %s46, %s47
      %p51 = pneg %p45
      %p52 = scmp.eq.s32.totalorder %s15, 1
      %p53 = por %p51, %p52
      %p54 = scmp.ne.s32.totalorder %s46, %s49
      %p55 = scmp.eq.s32.totalorder %s15, 0
      %p56 = por %p54, %p55
      %p57 = scmp.ne.s32.totalorder %s46, %s49
      %p58 = scmp.eq.s32.totalorder %s20, 1
      %p59 = por %p57, %p58
      %p60 = scmp.ne.s32.totalorder %s49, %s50
      %p61 = scmp.eq.s32.totalorder %s20, 0
      %p62 = por %p60, %p61
      %p63 = scmp.ne.s32.totalorder %s49, %s50
      %p64 = scmp.eq.s32.totalorder %s21, 1
      %p65 = por %p63, %p64
      %p67 = scmp.ne.s32.totalorder %s50, %s66
      %p68 = scmp.eq.s32.totalorder %s21, 0
      %p69 = por %p67, %p68
      %s70 = ssub.s32 %s15, %s22
      %p71 = scmp.eq.s32.totalorder %s70, 0
      %s73 = sadd.s32 %s72, 1
      %s74 = scalar_select %p71, %s72, %s73
      %p77 = pneg %p71
      %p78 = scmp.eq.s32.totalorder %s15, 1
      %p79 = por %p77, %p78
      %p80 = scmp.ne.s32.totalorder %s72, %s75
      %p81 = scmp.eq.s32.totalorder %s15, 0
      %p82 = por %p80, %p81
      %p83 = scmp.ne.s32.totalorder %s72, %s75
      %p84 = scmp.eq.s32.totalorder %s20, 1
      %p85 = por %p83, %p84
      %p86 = scmp.ne.s32.totalorder %s75, %s76
      %p87 = scmp.eq.s32.totalorder %s20, 0
      %p88 = por %p86, %p87
      %p89 = scmp.ne.s32.totalorder %s75, %s76
      %p90 = scmp.eq.s32.totalorder %s21, 1
      %p91 = por %p89, %p90
      %p93 = scmp.ne.s32.totalorder %s76, %s92
      %p94 = scmp.eq.s32.totalorder %s21, 0
      %p95 = por %p93, %p94
      %p96 = scmp.le.s32.totalorder 1, %s15
      %p97 = scmp.lt.s32.totalorder %s15, 3
      %p98 = pnand %p96, %p97
      %p99 = pneg %p98
      // Predicated region
      $region9: #{tpu_custom_call.1} parent=5 // pred_check
        _
      $region10: #{tpu_custom_call.1} parent=5 // pred_check_branch
        %101 = sbr.rel (%p98) target = $region12
      $region11: #{tpu_custom_call.1} parent=5 // pred_region
        %s102 = ssub.s32 %s15, 1
        // Predicated region
        $region13: #{tpu_custom_call.1} parent=11 // pred_check
          %p103 = pneg %p36
        $region14: #{tpu_custom_call.1} parent=11 // pred_check_branch
          %105 = sbr.rel (%p103) target = $region16
        $region15: #{tpu_custom_call.1} parent=11 // pred_region
          %s107 = ssub.s32 16, 16
          %108 = vsyncadd [#allocation5], %s107
          %111 = dma.hbm_to_smem %s0, 16, [#allocation2], [#allocation5]
        $region16: #{tpu_custom_call.1} parent=11 // pred_fallthru
          _
      $region12: #{tpu_custom_call.1} parent=5 // pred_fallthru
        _
      %p112 = scmp.lt.s32.totalorder %s15, 2
      // Predicated region
      $region17: #{tpu_custom_call.1} parent=5 // pred_check
        %p113 = pneg %p112
      $region18: #{tpu_custom_call.1} parent=5 // pred_check_branch
        %115 = sbr.rel (%p113) target = $region20
      $region19: #{tpu_custom_call.1} parent=5 // pred_region
        // Predicated region
        $region21: #{tpu_custom_call.1} parent=19 // pred_check
          %p116 = pneg %p56
        $region22: #{tpu_custom_call.1} parent=19 // pred_check_branch
          %118 = sbr.rel (%p116) target = $region24
        $region23: #{tpu_custom_call.1} parent=19 // pred_region
          %s119 = sand.u32 %s46, 1
          %s120 = scalar_lea.sflag [#allocation3], %s119
          %s121 = sand.u32 %s46, 1
          %s122 = smul.addr %s121, 8
          %s123 = scalar_lea.vmem [#allocation6], %s122
          %s125 = ssub.s32 128, 128
          %126 = vsyncadd %s120, %s125
          %s127 = smul.addr %s15, 128
          %s128 = scalar_lea.hbm %s1, %s127
          %s130 = sshll.u32 %s123, 4
          %s131 = int_to_ptr.vmem [resolvable:$true] %s130
          %133 = dma.hbm_to_vmem [thread:$0]  %s128, 128, %s131, %s120
        $region24: #{tpu_custom_call.1} parent=19 // pred_fallthru
          _
      $region20: #{tpu_custom_call.1} parent=5 // pred_fallthru
        _
      %p134 = scmp.le.s32.totalorder 1, %s15
      %p135 = scmp.lt.s32.totalorder %s15, 3
      %p136 = pnand %p134, %p135
      %p137 = pneg %p136
      // Predicated region
      $region25: #{tpu_custom_call.1} parent=5 // pred_check
        _
      $region26: #{tpu_custom_call.1} parent=5 // pred_check_branch
        %139 = sbr.rel (%p136) target = $region28
      $region27: #{tpu_custom_call.1} parent=5 // pred_region
        %s140 = ssub.s32 %s15, 1
        // Predicated region
        $region29: #{tpu_custom_call.1} parent=27 // pred_check
          %p141 = pneg %p36
        $region30: #{tpu_custom_call.1} parent=27 // pred_check_branch
          %143 = sbr.rel (%p141) target = $region32
        $region31: #{tpu_custom_call.1} parent=27 // pred_region
          %144 = dma.done [#allocation5], 16
        $region32: #{tpu_custom_call.1} parent=27 // pred_fallthru
          _
        %s145 = sand.u32 %s49, 1
        %s146 = scalar_lea.sflag [#allocation3], %s145
        %s147 = sand.u32 %s49, 1
        %s148 = smul.addr %s147, 8
        %s149 = scalar_lea.vmem [#allocation6], %s148
        // Predicated region
        $region33: #{tpu_custom_call.1} parent=27 // pred_check
          %p150 = pneg %p62
        $region34: #{tpu_custom_call.1} parent=27 // pred_check_branch
          %152 = sbr.rel (%p150) target = $region36
        $region35: #{tpu_custom_call.1} parent=27 // pred_region
          %153 = dma.done %s146, 128
        $region36: #{tpu_custom_call.1} parent=27 // pred_fallthru
          _
        %154 = sfence
        %p155 = pneg %p36
        %p156 = pneg %p33
        %s157 = sand.u32 %s49, 1
        %s158 = scalar_lea.sflag [#allocation3], %s157
        %s159 = sand.u32 %s49, 1
        %s160 = smul.addr %s159, 8
        %s161 = scalar_lea.vmem [#allocation6], %s160
        %p162 = pneg %p62
        %p163 = pneg %p59
        %p164 = pneg %p88
        %p165 = pneg %p85
        %s166 = sand.u32 %s75, 1
        %s167 = scalar_lea.sflag [#allocation4], %s166
        %s168 = sand.u32 %s75, 1
        %s169 = smul.addr %s168, 8
        %s170 = scalar_lea.vmem [#allocation7], %s169
        %s171 = sld [smem:[#allocation2]]
        %s172 = sld [smem:[#allocation2 + $0x1]]
        %v173 = vld [vmem:[%s149] sm:$0xff]
        %v174 = vstv %s171
        %v175 = vmul.f32 %v173, %v174
        %v176 = vadd.f32 %v175, 0.5
        %v177 = vfloor.f32 %v176
        %v178 = vmax.f32 %v177, 0.0
        %v179 = vmin.f32 %v178, 32.0
        %v180 = vstv %s172
        %v181 = vmul.f32 %v179, %v180
        %182 = vst [vmem:[%s170] sm:$0xff] %v181
        %s183 = sand.u32 %s75, 1
        %s184 = scalar_lea.sflag [#allocation4], %s183
        %s185 = sand.u32 %s75, 1
        %s186 = smul.addr %s185, 8
        %s187 = scalar_lea.vmem [#allocation7], %s186
        // Predicated region
        $region37: #{tpu_custom_call.1} parent=27 // pred_check
          %p188 = pneg %p85
        $region38: #{tpu_custom_call.1} parent=27 // pred_check_branch
          %190 = sbr.rel (%p188) target = $region40
        $region39: #{tpu_custom_call.1} parent=27 // pred_region
          %s192 = ssub.s32 128, 128
          %193 = vsyncadd %s184, %s192
          %s194 = smul.addr %s20, 128
          %s195 = scalar_lea.hbm %s2, %s194
          %s197 = sshll.u32 %s187, 4
          %s198 = int_to_ptr.vmem [resolvable:$true] %s197
          %200 = dma.vmem_to_hbm [thread:$0]  %s198, 128, %s195, %s184
        $region40: #{tpu_custom_call.1} parent=27 // pred_fallthru
          _
      $region28: #{tpu_custom_call.1} parent=5 // pred_fallthru
        _
      %p201 = scmp.le.s32.totalorder 2, %s15
      // Predicated region
      $region41: #{tpu_custom_call.1} parent=5 // pred_check
        %p202 = pneg %p201
      $region42: #{tpu_custom_call.1} parent=5 // pred_check_branch
        %204 = sbr.rel (%p202) target = $region44
      $region43: #{tpu_custom_call.1} parent=5 // pred_region
        %s205 = ssub.s32 %s15, 2
        // Predicated region
        $region45: #{tpu_custom_call.1} parent=43 // pred_check
          %p206 = pneg %p91
        $region46: #{tpu_custom_call.1} parent=43 // pred_check_branch
          %208 = sbr.rel (%p206) target = $region48
        $region47: #{tpu_custom_call.1} parent=43 // pred_region
          %s209 = sand.u32 %s76, 1
          %s210 = scalar_lea.sflag [#allocation4], %s209
          %s211 = sand.u32 %s76, 1
          %s212 = smul.addr %s211, 8
          %s213 = scalar_lea.vmem [#allocation7], %s212
          %214 = dma.done %s210, 128
        $region48: #{tpu_custom_call.1} parent=43 // pred_fallthru
          _
      $region44: #{tpu_custom_call.1} parent=5 // pred_fallthru
        _
    $region6: #{tpu_custom_call.1} parent=1 // loop_footer
      %s19 = sadd.s32 1, %s15
    $region7: #{tpu_custom_call.1} parent=1 // loop_footer_branch
      %14 = sbr.rel target = $region3
    $region8: #{tpu_custom_call.1} parent=1 // loop_exit
      _
    %215 = vsyncpa [#allocation3], 1
    %s216 = scalar_lea.sflag [#allocation3], 1
    %217 = vsyncpa %s216, 1
    %218 = vsyncpa [#allocation4], 1
    %s219 = scalar_lea.sflag [#allocation4], 1
    %220 = vsyncpa %s219, 1
    %221 = vsyncpa [#allocation5], 1
    %s222 = scalar_lea.sflag [#allocation5], 1
    %223 = vsyncpa %s222, 1

</llo_original>
